<compile_context>
chip_gen: v5e
topology: v5e:2x2
jax: 0.10.0
libtpu: 0.0.40
codegen_flags: <defaults>
</compile_context>

<pallas_src>
import functools
import math

import numpy as np
import jax
import jax.numpy as jnp
from jax.experimental import pallas as pl
from jax.experimental.pallas import tpu as pltpu


def _make_quadrature_weights(H, W, pole_mask=0, dtype=jnp.float32):
    """Normalized 'naive' S2 quadrature weights on an equiangular grid (sum over (H, W) == 1)."""
    h = np.arange(H, dtype=np.float64)
    theta = (h + 0.5) * math.pi / H                       # colatitude
    wlat = np.sin(theta) * (math.pi / H)
    if pole_mask > 0:
        wlat[:pole_mask] = 0.0
        wlat[H - pole_mask:] = 0.0
    q = np.broadcast_to(wlat[:, None] * (2.0 * math.pi / W), (H, W)).copy()
    q /= q.sum()                                          # GridQuadrature(..., normalize=True)
    return jnp.asarray(q, dtype=dtype)


def _geo_inorm_kernel(q_ref, x_ref, o_ref, *, eps):
    """One (1, tc, H*W) or (1, tc, H, W) block: per-channel weighted mean/var + normalize."""
    out_dtype = o_ref.dtype
    x = x_ref[0]                       # (tc, HW) or (tc, H, W), IO dtype (no explicit astype copy)
    q = q_ref[...]                     # (1, HW)  or (H, W), float32
    while q.ndim < x.ndim:             # broadcast over the channel axis
        q = q[None]
    red = tuple(range(1, x.ndim))

    # Pass 1: weighted mean with f32 accumulation (q is f32, so the product promotes to f32).
    mean = jnp.sum(q * x, axis=red, keepdims=True)                  # (tc, 1[, 1]) f32

    # Pass 2: stable weighted variance E_q[(x - mean)^2] in f32, matching the torch reference and
    # avoiding the catastrophic cancellation of E[x^2] - mean^2 when |mean| >> std.
    xc = x - mean                                                   # f32 (promoted)
    var = jnp.sum((q * xc) * xc, axis=red, keepdims=True)           # (tc, 1[, 1]) f32

    # torch parity: statistics are cast back to the IO dtype before normalizing.
    mean_d = mean.astype(out_dtype)
    var_d = var.astype(out_dtype)
    inv = jax.lax.rsqrt(var_d.astype(jnp.float32) + eps).astype(out_dtype)   # tiny tensor, EUP

    if out_dtype == jnp.float32:
        # mean_d == mean exactly for f32 IO: reuse the centered block (no extra block temp).
        o_ref[0] = (xc * inv).astype(out_dtype)
    else:
        # Normalize entirely in the IO dtype (halves VPU work / vreg pressure for bf16 on
        # v6e/v7x); the statistics above were still accumulated in f32.
        o_ref[0] = ((x - mean_d) * inv).astype(out_dtype)
    # TODO(synk): affine=True path (per-channel weight/bias) omitted; module default is affine=False.


def _choose_channel_tile(B, C, budget_channels, channel_tile):
    """Returns (use_flattened_layout, channel_tile)."""
    if channel_tile is not None:
        tc = max(1, min(int(channel_tile), C))
        return (tc == C) or (tc % 8 == 0), tc

    max_tc = max(1, budget_channels)
    # Keep the grid at >= 2 steps so both v7x TensorCores (and the pipeline) stay busy.
    if B == 1 and C > 1:
        max_tc = min(max_tc, -(-C // 2))

    # Lane-dense flattened (B, C, H*W) layout: tc must equal C or be a multiple of 8 sublanes.
    if C <= max_tc:
        return True, C
    tc8 = 0
    d = 8
    while d <= min(C, max_tc):
        if C % d == 0:
            tc8 = d                        # largest multiple of 8 that divides C
        d += 8
    if tc8 > 0:
        return True, tc8
    if max_tc >= 8:
        return True, (max_tc // 8) * 8     # does not divide C; tail block masked on store
    # 4-D fallback (1, tc, H, W): tc unconstrained (H, W stay full); prefer a divisor of C.
    tc = 1
    for d in range(1, min(C, max_tc) + 1):
        if C % d == 0:
            tc = d
    return False, tc


def geometric_instance_norm_s2(x, quad_weights, eps=1e-5, channel_tile=None,
                               vmem_limit_bytes=None):
    """x: (B, C, H, W); quad_weights: (H, W), normalized so it sums to 1."""
    B, C, H, W = x.shape
    HW = H * W
    itemsize = jnp.dtype(x.dtype).itemsize
    q_bytes = HW * 4

    # ---- chip-aware VMEM budget --------------------------------------------------------------
    try:
        vmem_cap = int(pltpu.get_tpu_info().vmem_capacity_bytes)
    except Exception:
        vmem_cap = 64 << 20                        # conservative fallback (v7x per-core capacity)
    if vmem_limit_bytes is None:
        # ~96 MiB on v5e/v6e (128 MiB physical), ~48 MiB on v7x (64 MiB physical).
        vmem_limit = max(min(int(vmem_cap * 3 // 4), 100 << 20), 32 << 20)
    else:
        vmem_limit = int(vmem_limit_bytes)

    # Per-channel VMEM cost of one grid step: double-buffered input + output blocks (IO dtype)
    # plus ~4 block-sized f32 temporaries from the two-pass statistics / normalize.
    per_channel = HW * (4 * itemsize + 4 * 4)
    fixed = 2 * q_bytes + (4 << 20)                # double-buffered quadrature block + slack
    budget_channels = max(int((vmem_limit - fixed) // per_channel), 1)
    # TODO(synk): single-buffer the constant quadrature block (pipeline_mode=pl.Buffered(1)) once
    # verified on the target jax version; it is budgeted at 2x here instead.

    flatten, tc = _choose_channel_tile(B, C, budget_channels, channel_tile)

    if flatten:
        xs = x.reshape(B, C, HW)
        qs = quad_weights.reshape(1, HW).astype(jnp.float32)
        x_block = (1, tc, HW)
        x_index = lambda b, c: (b, c, 0)
    else:
        xs = x
        qs = quad_weights.astype(jnp.float32)      # (H, W)
        x_block = (1, tc, H, W)
        x_index = lambda b, c: (b, c, 0, 0)
    q_index = lambda b, c: (0,) * qs.ndim

    grid = (B, pl.cdiv(C, tc))

    out = pl.pallas_call(
        functools.partial(_geo_inorm_kernel, eps=eps),
        out_shape=jax.ShapeDtypeStruct(xs.shape, x.dtype),
        grid_spec=pltpu.PrefetchScalarGridSpec(
            num_scalar_prefetch=0,
            grid=grid,
            in_specs=[
                pl.BlockSpec(qs.shape, q_index),   # quadrature weights (constant block)
                pl.BlockSpec(x_block, x_index),
            ],
            out_specs=pl.BlockSpec(x_block, x_index),
        ),
        compiler_params=pltpu.CompilerParams(
            dimension_semantics=("parallel", "parallel"),
            vmem_limit_bytes=vmem_limit,
        ),
        cost_estimate=pl.CostEstimate(
            flops=8 * B * C * HW,
            transcendentals=B * C,
            bytes_accessed=2 * B * C * HW * itemsize + q_bytes,
        ),
    )(qs, xs)

    return out.reshape(B, C, H, W)


def _reference(x, q, eps=1e-5):
    xf = x.astype(jnp.float32)
    qf = q.astype(jnp.float32)[None, None]
    mean = jnp.sum(qf * xf, axis=(2, 3), keepdims=True)
    var = jnp.sum(qf * jnp.square(xf - mean), axis=(2, 3), keepdims=True)
    return ((xf - mean) / jnp.sqrt(var + eps)).astype(x.dtype)


if __name__ == "__main__":
    eps = 1e-5
    key = jax.random.PRNGKey(0)
    k1, k2 = jax.random.split(key)

    # ---- Config 1: f32, lane-dense flattened path (tc == C), grid (2, 1). --------------------
    B, C, H, W = 2, 4, 16, 32
    q = _make_quadrature_weights(H, W)
    x = 1.5 * jax.random.normal(k1, (B, C, H, W), jnp.float32) + 3.0   # nonzero mean: two-pass var
    ref = _reference(x, q, eps)

    out = jax.block_until_ready(geometric_instance_norm_s2(x, q, eps=eps))
    assert out.shape == x.shape and out.dtype == x.dtype
    assert jnp.allclose(out, ref, atol=5e-5, rtol=5e-5), "mismatch vs reference (flattened path)"

    # ---- Config 2: 4-D fallback path ((1, 1, H, W) blocks), grid (2, 4). ----------------------
    out4d = jax.block_until_ready(geometric_instance_norm_s2(x, q, eps=eps, channel_tile=1))
    assert jnp.allclose(out4d, ref, atol=5e-5, rtol=5e-5), "mismatch vs reference (4-D path)"

    # ---- Config 3: bf16 IO, flattened path with a channel split (tc=8 | C=16), grid (2, 2). ---
    B2, C2 = 2, 16
    x2 = (1.5 * jax.random.normal(k2, (B2, C2, H, W), jnp.float32) + 3.0).astype(jnp.bfloat16)
    ref2 = _reference(x2, q, eps)
    out2 = jax.block_until_ready(geometric_instance_norm_s2(x2, q, eps=eps, channel_tile=8))
    assert out2.dtype == jnp.bfloat16
    assert jnp.allclose(out2.astype(jnp.float32), ref2.astype(jnp.float32),
                        atol=5e-2, rtol=5e-2), "mismatch vs reference (bf16 split path)"

    print("KERNEL_OK")
</pallas_src>

<mosaic_0001>
module attributes {stable_mosaic.version = 11 : i64} {
  func.func @_geo_inorm_kernel(%arg0: i32, %arg1: i32, %arg2: memref<1x512xf32, #tpu.memory_space<vmem>>, %arg3: memref<1x4x512xf32, #tpu.memory_space<vmem>>, %arg4: memref<1x4x512xf32, #tpu.memory_space<vmem>>) attributes {dimension_semantics = [#tpu.dimension_semantics<parallel>, #tpu.dimension_semantics<parallel>], iteration_bounds = array<i64: 2, 1>, scalar_prefetch = 0 : i64, scratch_operands = 0 : i64, tpu.core_type = #tpu.core_type<tc>, window_params = [{pipeline_mode = #tpu.pipeline_mode<synchronous>, transform_indices = @transform_0, window_bounds = array<i64: 1, 512>}, {transform_indices = @transform_1, window_bounds = array<i64: 1, 4, 512>}, {transform_indices = @transform_2, window_bounds = array<i64: 1, 4, 512>}]} {
    %c0 = arith.constant 0 : index
    %c0_0 = arith.constant 0 : index
    %c0_1 = arith.constant 0 : index
    %0 = vector.load %arg3[%c0, %c0_0, %c0_1] : memref<1x4x512xf32, #tpu.memory_space<vmem>>, vector<1x4x512xf32>
    %1 = vector.shape_cast %0 : vector<1x4x512xf32> to vector<4x512xf32>
    %c0_2 = arith.constant 0 : index
    %c0_3 = arith.constant 0 : index
    %2 = vector.load %arg2[%c0_2, %c0_3] : memref<1x512xf32, #tpu.memory_space<vmem>>, vector<1x512xf32>
    %3 = vector.broadcast %2 : vector<1x512xf32> to vector<4x512xf32>
    %4 = arith.mulf %3, %1 : vector<4x512xf32>
    %cst = arith.constant dense<0.000000e+00> : vector<4xf32>
    %5 = vector.multi_reduction <add>, %4, %cst [1] : vector<4x512xf32> to vector<4xf32>
    %6 = vector.shape_cast %5 : vector<4xf32> to vector<4x1xf32>
    %7 = vector.broadcast %6 : vector<4x1xf32> to vector<4x512xf32>
    %8 = arith.subf %1, %7 : vector<4x512xf32>
    %9 = vector.broadcast %2 : vector<1x512xf32> to vector<4x512xf32>
    %10 = arith.mulf %9, %8 : vector<4x512xf32>
    %11 = arith.mulf %10, %8 : vector<4x512xf32>
    %cst_4 = arith.constant dense<0.000000e+00> : vector<4xf32>
    %12 = vector.multi_reduction <add>, %11, %cst_4 [1] : vector<4x512xf32> to vector<4xf32>
    %13 = vector.shape_cast %12 : vector<4xf32> to vector<4x1xf32>
    %cst_5 = arith.constant 9.99999974E-6 : f32
    %14 = vector.broadcast %cst_5 : f32 to vector<4x1xf32>
    %15 = arith.addf %13, %14 : vector<4x1xf32>
    %16 = math.rsqrt %15 : vector<4x1xf32>
    %17 = vector.broadcast %16 : vector<4x1xf32> to vector<4x512xf32>
    %18 = arith.mulf %8, %17 : vector<4x512xf32>
    %c0_6 = arith.constant 0 : index
    %c0_7 = arith.constant 0 : index
    %c0_8 = arith.constant 0 : index
    %19 = vector.load %arg4[%c0_6, %c0_7, %c0_8] : memref<1x4x512xf32, #tpu.memory_space<vmem>>, vector<1x4x512xf32>
    %20 = vector.shape_cast %19 : vector<1x4x512xf32> to vector<4x512xf32>
    %21 = vector.shape_cast %18 : vector<4x512xf32> to vector<1x4x512xf32>
    tpu.vector_store %arg4[%c0_6, %c0_7, %c0_8], %21 {strides = array<i32>} : memref<1x4x512xf32, #tpu.memory_space<vmem>>, vector<1x4x512xf32>,
    return
  }
  func.func @transform_0(%arg0: i32, %arg1: i32) -> (i32, i32) {
    %c0_i32 = arith.constant 0 : i32
    %c0_i32_0 = arith.constant 0 : i32
    %c0_i32_1 = arith.constant 0 : i32
    return %c0_i32, %c0_i32_0 : i32, i32
  }
  func.func @transform_1(%arg0: i32, %arg1: i32) -> (i32, i32, i32) {
    %c0_i32 = arith.constant 0 : i32
    %c0_i32_0 = arith.constant 0 : i32
    return %arg0, %arg1, %c0_i32 : i32, i32, i32
  }
  func.func @transform_2(%arg0: i32, %arg1: i32) -> (i32, i32, i32) {
    %c0_i32 = arith.constant 0 : i32
    %c0_i32_0 = arith.constant 0 : i32
    return %arg0, %arg1, %c0_i32 : i32, i32, i32
  }
}

</mosaic_0001>

<llo_original>
// kernel: tpu_custom_call.1
$region0: #{tpu_custom_call.1}
  #allocation0 [shape = 'u32[]', space=smem, size = 0x4, offset = 0x4, fixed_abs, tag = 'smem constant byte address 0x4 - core index']
  #allocation1 [shape = 'u32[72,128]{1,0:T(1,128)}', space=vmem, size = 0x9000, scoped, tag = 'internal scratch']
  %s0 = inlined_call_operand.hbm [shape: f32[1,512], index: 0, kind: input, shape index: {}]
  %s1 = inlined_call_operand.hbm [shape: f32[2,4,512], index: 1, kind: input, shape index: {}]
  %s2 = inlined_call_operand.hbm [shape: f32[2,4,512], index: 2, kind: output, shape index: {}]
  %s3 = sld [smem:[#allocation0]]
  $region49: #{tpu_custom_call.1} parent=0
    _
  %s5 = ssub.s32 1, %s3
  %s6 = scalar_select 0, %s5, %s3
  $region1: #{tpu_custom_call.1} parent=0
    #allocation2 [shape = 'u8[2048]{0}', space=vmem, size = 0x800, scoped, tag = 'input window, operand 0, single buffered']
    #allocation3 [shape = 's32[2]{0}', space=sflag, size = 0x8, scoped, tag = 'scoped memory for tpu_custom_call.1']
    #allocation4 [shape = 's32[2]{0}', space=sflag, size = 0x8, scoped, tag = 'scoped memory for tpu_custom_call.1']
    #allocation5 [shape = 'u8[16384]{0}', space=vmem, size = 0x4000, scoped, tag = 'input window, operand 1']
    #allocation6 [shape = 's32[2]{0}', space=sflag, size = 0x8, scoped, tag = 'scoped memory for tpu_custom_call.1']
    #allocation7 [shape = 'u8[16384]{0}', space=vmem, size = 0x4000, scoped, tag = 'output window, operand 0']
    %7 = vsyncpa [#allocation3], 0
    %8 = vsyncpa [#allocation6], 0
    %s9 = scalar_lea.sflag [#allocation6], 1
    %10 = vsyncpa %s9, 0
    %11 = vsyncpa [#allocation4], 0
    %s12 = scalar_lea.sflag [#allocation4], 1
    %13 = vsyncpa %s12, 0
    loop: start=0, step=1, limit=4
    $region2: #{tpu_custom_call.1} parent=1 // loop_pre_header
      _
    $region3: #{tpu_custom_call.1} parent=1 // loop_header
      %s15 = sphi 0, %s19
      %p16 = scmp.ge.s32.totalorder %s15, 4
      %s22 = sphi 0, %s34
      %s23 = sphi 0, %s30
      %s24 = sphi 0, %s22
      %s25 = sphi 0, %s23
      %s26 = sphi 0, %s24
      %s27 = sphi 0, %s25
      %s35 = sphi 0, %s35
      %s37 = sphi 0, %s35
      %s38 = sphi 0, %s37
      %s52 = sphi 0, %s38
      %s60 = sphi 0, %s62
      %s63 = sphi 0, %s60
      %s64 = sphi 0, %s63
      %s80 = sphi 0, %s64
      %s88 = sphi 0, %s90
      %s91 = sphi 0, %s88
      %s92 = sphi 0, %s91
      %s108 = sphi 0, %s92
    $region4: #{tpu_custom_call.1} parent=1 // loop_header_branch
      %18 = sbr.rel (%p16) target = $region8
    $region5: #{tpu_custom_call.1} parent=1 // loop_body
      %s20 = ssub.s32 %s15, 1
      %s21 = ssub.s32 %s15, 2
      %s28 = sadd.s32 1, %s23
      %p29 = scmp.ge.s32.totalorder %s28, 1
      %s30 = scalar_select %p29, 0, %s28
      %s31 = sadd.s32 1, %s22
      %s32 = scalar_select %p29, %s31, %s22
      %p33 = scmp.ge.s32.totalorder %s32, 2
      %s34 = scalar_select %p33, 0, %s32
      %s36 = sadd.s32 %s35, 1
      %p39 = scmp.eq.s32.totalorder %s15, 1
      %p40 = scmp.ne.s32.totalorder %s35, %s37
      %p41 = scmp.eq.s32.totalorder %s15, 0
      %p42 = por %p40, %p41
      %p43 = scmp.ne.s32.totalorder %s35, %s37
      %p44 = scmp.eq.s32.totalorder %s20, 1
      %p45 = por %p43, %p44
      %p46 = scmp.ne.s32.totalorder %s37, %s38
      %p47 = scmp.eq.s32.totalorder %s20, 0
      %p48 = por %p46, %p47
      %p49 = scmp.ne.s32.totalorder %s37, %s38
      %p50 = scmp.eq.s32.totalorder %s21, 1
      %p51 = por %p49, %p50
      %p53 = scmp.ne.s32.totalorder %s38, %s52
      %p54 = scmp.eq.s32.totalorder %s21, 0
      %p55 = por %p53, %p54
      %s56 = ssub.s32 %s22, %s34
      %s57 = ssub.s32 %s23, %s30
      %s58 = sor.u32 %s56, %s57
      %p59 = scmp.eq.s32.totalorder %s58, 0
      %s61 = sadd.s32 %s60, 1
      %s62 = scalar_select %p59, %s60, %s61
      %p65 = pneg %p59
      %p66 = scmp.eq.s32.totalorder %s15, 1
      %p67 = por %p65, %p66
      %p68 = scmp.ne.s32.totalorder %s60, %s63
      %p69 = scmp.eq.s32.totalorder %s15, 0
      %p70 = por %p68, %p69
      %p71 = scmp.ne.s32.totalorder %s60, %s63
      %p72 = scmp.eq.s32.totalorder %s20, 1
      %p73 = por %p71, %p72
      %p74 = scmp.ne.s32.totalorder %s63, %s64
      %p75 = scmp.eq.s32.totalorder %s20, 0
      %p76 = por %p74, %p75
      %p77 = scmp.ne.s32.totalorder %s63, %s64
      %p78 = scmp.eq.s32.totalorder %s21, 1
      %p79 = por %p77, %p78
      %p81 = scmp.ne.s32.totalorder %s64, %s80
      %p82 = scmp.eq.s32.totalorder %s21, 0
      %p83 = por %p81, %p82
      %s84 = ssub.s32 %s22, %s34
      %s85 = ssub.s32 %s23, %s30
      %s86 = sor.u32 %s84, %s85
      %p87 = scmp.eq.s32.totalorder %s86, 0
      %s89 = sadd.s32 %s88, 1
      %s90 = scalar_select %p87, %s88, %s89
      %p93 = pneg %p87
      %p94 = scmp.eq.s32.totalorder %s15, 1
      %p95 = por %p93, %p94
      %p96 = scmp.ne.s32.totalorder %s88, %s91
      %p97 = scmp.eq.s32.totalorder %s15, 0
      %p98 = por %p96, %p97
      %p99 = scmp.ne.s32.totalorder %s88, %s91
      %p100 = scmp.eq.s32.totalorder %s20, 1
      %p101 = por %p99, %p100
      %p102 = scmp.ne.s32.totalorder %s91, %s92
      %p103 = scmp.eq.s32.totalorder %s20, 0
      %p104 = por %p102, %p103
      %p105 = scmp.ne.s32.totalorder %s91, %s92
      %p106 = scmp.eq.s32.totalorder %s21, 1
      %p107 = por %p105, %p106
      %p109 = scmp.ne.s32.totalorder %s92, %s108
      %p110 = scmp.eq.s32.totalorder %s21, 0
      %p111 = por %p109, %p110
      %p112 = scmp.le.s32.totalorder 1, %s15
      %p113 = scmp.lt.s32.totalorder %s15, 3
      %p114 = pnand %p112, %p113
      %p115 = pneg %p114
      // Predicated region
      $region9: #{tpu_custom_call.1} parent=5 // pred_check
        _
      $region10: #{tpu_custom_call.1} parent=5 // pred_check_branch
        %117 = sbr.rel (%p114) target = $region12
      $region11: #{tpu_custom_call.1} parent=5 // pred_region
        %s118 = ssub.s32 %s15, 1
        // Predicated region
        $region13: #{tpu_custom_call.1} parent=11 // pred_check
          %p119 = pneg %p48
        $region14: #{tpu_custom_call.1} parent=11 // pred_check_branch
          %121 = sbr.rel (%p119) target = $region16
        $region15: #{tpu_custom_call.1} parent=11 // pred_region
          %123 = vsyncadd [#allocation3], 0
          %s125 = sshll.u32 %s0, 4
          %s126 = int_to_ptr.hbm [resolvable:$true] %s125
          %s127 = sshll.u32 [#allocation2], 4
          %s128 = int_to_ptr.vmem [resolvable:$true] %s127
          %130 = dma.hbm_to_vmem [thread:$0]  %s126, 64, %s128, [#allocation3]
        $region16: #{tpu_custom_call.1} parent=11 // pred_fallthru
          _
      $region12: #{tpu_custom_call.1} parent=5 // pred_fallthru
        _
      %p131 = scmp.lt.s32.totalorder %s15, 2
      // Predicated region
      $region17: #{tpu_custom_call.1} parent=5 // pred_check
        %p132 = pneg %p131
      $region18: #{tpu_custom_call.1} parent=5 // pred_check_branch
        %134 = sbr.rel (%p132) target = $region20
      $region19: #{tpu_custom_call.1} parent=5 // pred_region
        // Predicated region
        $region21: #{tpu_custom_call.1} parent=19 // pred_check
          %p135 = pneg %p70
        $region22: #{tpu_custom_call.1} parent=19 // pred_check_branch
          %137 = sbr.rel (%p135) target = $region24
        $region23: #{tpu_custom_call.1} parent=19 // pred_region
          %s138 = sand.u32 %s60, 1
          %s139 = scalar_lea.sflag [#allocation6], %s138
          %s140 = sand.u32 %s60, 1
          %s141 = smul.addr %s140, 16
          %s142 = scalar_lea.vmem [#allocation5], %s141
          %144 = vsyncadd %s139, 0
          %s145 = smul.addr %s23, 4
          %s146 = smul.addr %s22, 4
          %s147 = sadd.s32 %s145, %s146
          %s148 = smul.addr %s147, 4
          %s149 = scalar_lea.hbm %s1, %s148
          %s151 = sshll.u32 %s149, 4
          %s152 = int_to_ptr.hbm [resolvable:$true] %s151
          %s153 = sshll.u32 %s142, 4
          %s154 = int_to_ptr.vmem [resolvable:$true] %s153
          %156 = dma.hbm_to_vmem [thread:$0]  %s152, 256, %s154, %s139
        $region24: #{tpu_custom_call.1} parent=19 // pred_fallthru
          _
      $region20: #{tpu_custom_call.1} parent=5 // pred_fallthru
        _
      %p157 = scmp.le.s32.totalorder 1, %s15
      %p158 = scmp.lt.s32.totalorder %s15, 3
      %p159 = pnand %p157, %p158
      %p160 = pneg %p159
      // Predicated region
      $region25: #{tpu_custom_call.1} parent=5 // pred_check
        _
      $region26: #{tpu_custom_call.1} parent=5 // pred_check_branch
        %162 = sbr.rel (%p159) target = $region28
      $region27: #{tpu_custom_call.1} parent=5 // pred_region
        %s163 = ssub.s32 %s15, 1
        // Predicated region
        $region29: #{tpu_custom_call.1} parent=27 // pred_check
          %p164 = pneg %p48
        $region30: #{tpu_custom_call.1} parent=27 // pred_check_branch
          %166 = sbr.rel (%p164) target = $region32
        $region31: #{tpu_custom_call.1} parent=27 // pred_region
          %168 = dma.done [#allocation3], 64
        $region32: #{tpu_custom_call.1} parent=27 // pred_fallthru
          _
        %s169 = sand.u32 %s63, 1
        %s170 = scalar_lea.sflag [#allocation6], %s169
        %s171 = sand.u32 %s63, 1
        %s172 = smul.addr %s171, 16
        %s173 = scalar_lea.vmem [#allocation5], %s172
        // Predicated region
        $region33: #{tpu_custom_call.1} parent=27 // pred_check
          %p174 = pneg %p76
        $region34: #{tpu_custom_call.1} parent=27 // pred_check_branch
          %176 = sbr.rel (%p174) target = $region36
        $region35: #{tpu_custom_call.1} parent=27 // pred_region
          %178 = dma.done %s170, 256
        $region36: #{tpu_custom_call.1} parent=27 // pred_fallthru
          _
        %p179 = pneg %p48
        %p180 = pneg %p45
        %s181 = sand.u32 %s63, 1
        %s182 = scalar_lea.sflag [#allocation6], %s181
        %s183 = sand.u32 %s63, 1
        %s184 = smul.addr %s183, 16
        %s185 = scalar_lea.vmem [#allocation5], %s184
        %p186 = pneg %p76
        %p187 = pneg %p73
        %p188 = pneg %p104
        %p189 = pneg %p101
        %s190 = sand.u32 %s91, 1
        %s191 = scalar_lea.sflag [#allocation4], %s190
        %s192 = sand.u32 %s91, 1
        %s193 = smul.addr %s192, 16
        %s194 = scalar_lea.vmem [#allocation7], %s193
        %v195 = vld [vmem:[%s173] sm:$0xff]
        %v196 = vld [vmem:[%s173 + $0x8] sm:$0xff]
        %v197 = vld [vmem:[#allocation2] sm:$0xf]
        %v199 = vperm.slane %v197, 0
        %v200 = vperm.slane %v197, 1
        %v201 = vperm.slane %v197, 2
        %v202 = vperm.slane %v197, 3
        %209 = vst [vmem:[#allocation1] ss:$2 sm:$0xff] %v195
        %s210 = scalar_lea.vmem [#allocation1], 16
        %211 = vst [vmem:[%s210] ss:$2 sm:$0xff] %v196
        %v212 = vld.sshfl [vmem:[#allocation1] sm:$0xff pattern:$0x75316420]
        %v213 = vld.sshfl [vmem:[#allocation1 + $0x8] sm:$0xff pattern:$0x75316420]
        %v214 = vld.sshfl [vmem:[#allocation1 + $0x10] sm:$0xff pattern:$0x75316420]
        %v215 = vld.sshfl [vmem:[#allocation1 + $0x18] sm:$0xff pattern:$0x75316420]
        %v220 = vmul.f32 %v199, %v212
        %v221 = vmul.f32 %v200, %v213
        %v222 = vmul.f32 %v201, %v214
        %v223 = vmul.f32 %v202, %v215
        %vm224 = vcmask 1043456
        %v225 = vsel %vm224, %v220, 0.0
        %v226 = vsel %vm224, %v221, 0.0
        %v227 = vadd.f32 %v225, %v226
        %v228 = vsel %vm224, %v222, 0.0
        %v229 = vadd.f32 %v227, %v228
        %v230 = vsel %vm224, %v223, 0.0
        %v231 = vadd.f32 %v229, %v230
        %232 = vadd.xlane.f32.xlu0 %v231
        %v233 = vpop.xlane.xlu0 %232
        %v236 = vunpack.c.l.s4 839922192
        %v237 = vunpack.c.0.s8 %v236
        %v238 = vperm.slane %v233, %v237
        %v240 = vsub.f32 %v195, %v238
        %v241 = vsub.f32 %v196, %v238
        %244 = vst [vmem:[#allocation1] ss:$2 sm:$0xff] %v240
        %s245 = scalar_lea.vmem [#allocation1], 16
        %246 = vst [vmem:[%s245] ss:$2 sm:$0xff] %v241
        %v247 = vld.sshfl [vmem:[#allocation1] sm:$0xff pattern:$0x75316420]
        %v248 = vld.sshfl [vmem:[#allocation1 + $0x8] sm:$0xff pattern:$0x75316420]
        %v249 = vld.sshfl [vmem:[#allocation1 + $0x10] sm:$0xff pattern:$0x75316420]
        %v250 = vld.sshfl [vmem:[#allocation1 + $0x18] sm:$0xff pattern:$0x75316420]
        %v255 = vmul.f32 %v199, %v247
        %v256 = vmul.f32 %v200, %v248
        %v257 = vmul.f32 %v201, %v249
        %v258 = vmul.f32 %v202, %v250
        %259 = vst [vmem:[#allocation1] ss:$2 sm:$0xff] %v240
        %s260 = scalar_lea.vmem [#allocation1], 16
        %261 = vst [vmem:[%s260] ss:$2 sm:$0xff] %v241
        %v262 = vld.sshfl [vmem:[#allocation1] sm:$0xff pattern:$0x75316420]
        %v263 = vld.sshfl [vmem:[#allocation1 + $0x8] sm:$0xff pattern:$0x75316420]
        %v264 = vld.sshfl [vmem:[#allocation1 + $0x10] sm:$0xff pattern:$0x75316420]
        %v265 = vld.sshfl [vmem:[#allocation1 + $0x18] sm:$0xff pattern:$0x75316420]
        %v270 = vmul.f32 %v255, %v262
        %v271 = vmul.f32 %v256, %v263
        %v272 = vmul.f32 %v257, %v264
        %v273 = vmul.f32 %v258, %v265
        %v274 = vsel %vm224, %v270, 0.0
        %v275 = vsel %vm224, %v271, 0.0
        %v276 = vadd.f32 %v274, %v275
        %v277 = vsel %vm224, %v272, 0.0
        %v278 = vadd.f32 %v276, %v277
        %v279 = vsel %vm224, %v273, 0.0
        %v280 = vadd.f32 %v278, %v279
        %281 = vadd.xlane.f32.xlu0 %v280
        %v282 = vpop.xlane.xlu0 %281
        %v283 = vadd.f32 %v282, 1e-05
        %v284 = vrsqrt.pop %v283
        %v285 = vmul.f32 %v284, %v283
        %v286 = vmul.f32 %v285, %v284
        %v287 = vmul.f32 0.5, %v286
        %v288 = vsub.f32 1.5, %v287
        %v289 = vmul.f32 %v284, %v288
        %vm290 = vweird.f32 %v283
        %vm291 = vweird.f32 %v284
        %vm292 = vmor %vm290, %vm291
        %v293 = vsel %vm292, %v284, %v289
        %v296 = vunpack.c.l.s4 839922192
        %v297 = vunpack.c.0.s8 %v296
        %v298 = vperm.slane %v293, %v297
        %v300 = vmul.f32 %v240, %v298
        %v301 = vmul.f32 %v241, %v298
        %302 = vst [vmem:[%s194] sm:$0xff] %v300
        %303 = vst [vmem:[%s194 + $0x8] sm:$0xff] %v301
        %s304 = sand.u32 %s91, 1
        %s305 = scalar_lea.sflag [#allocation4], %s304
        %s306 = sand.u32 %s91, 1
        %s307 = smul.addr %s306, 16
        %s308 = scalar_lea.vmem [#allocation7], %s307
        // Predicated region
        $region37: #{tpu_custom_call.1} parent=27 // pred_check
          %p309 = pneg %p101
        $region38: #{tpu_custom_call.1} parent=27 // pred_check_branch
          %311 = sbr.rel (%p309) target = $region40
        $region39: #{tpu_custom_call.1} parent=27 // pred_region
          %313 = vsyncadd %s305, 0
          %s314 = smul.addr %s25, 4
          %s315 = smul.addr %s24, 4
          %s316 = sadd.s32 %s314, %s315
          %s317 = smul.addr %s316, 4
          %s318 = scalar_lea.hbm %s2, %s317
          %s320 = sshll.u32 %s308, 4
          %s321 = int_to_ptr.vmem [resolvable:$true] %s320
          %s322 = sshll.u32 %s318, 4
          %s323 = int_to_ptr.hbm [resolvable:$true] %s322
          %325 = dma.vmem_to_hbm [thread:$0]  %s321, 256, %s323, %s305
        $region40: #{tpu_custom_call.1} parent=27 // pred_fallthru
          _
      $region28: #{tpu_custom_call.1} parent=5 // pred_fallthru
        _
      %p326 = scmp.le.s32.totalorder 2, %s15
      // Predicated region
      $region41: #{tpu_custom_call.1} parent=5 // pred_check
        %p327 = pneg %p326
      $region42: #{tpu_custom_call.1} parent=5 // pred_check_branch
        %329 = sbr.rel (%p327) target = $region44
      $region43: #{tpu_custom_call.1} parent=5 // pred_region
        %s330 = ssub.s32 %s15, 2
        // Predicated region
        $region45: #{tpu_custom_call.1} parent=43 // pred_check
          %p331 = pneg %p107
        $region46: #{tpu_custom_call.1} parent=43 // pred_check_branch
          %333 = sbr.rel (%p331) target = $region48
        $region47: #{tpu_custom_call.1} parent=43 // pred_region
          %s334 = sand.u32 %s92, 1
          %s335 = scalar_lea.sflag [#allocation4], %s334
          %s336 = sand.u32 %s92, 1
          %s337 = smul.addr %s336, 16
          %s338 = scalar_lea.vmem [#allocation7], %s337
          %340 = dma.done %s335, 256
        $region48: #{tpu_custom_call.1} parent=43 // pred_fallthru
          _
      $region44: #{tpu_custom_call.1} parent=5 // pred_fallthru
        _
    $region6: #{tpu_custom_call.1} parent=1 // loop_footer
      %s19 = sadd.s32 1, %s15
    $region7: #{tpu_custom_call.1} parent=1 // loop_footer_branch
      %14 = sbr.rel target = $region3
    $region8: #{tpu_custom_call.1} parent=1 // loop_exit
      _
    %341 = vsyncpa [#allocation3], 1
    %s342 = scalar_lea.sflag [#allocation3], 1
    %343 = vsyncpa %s342, 1
    %344 = vsyncpa [#allocation6], 1
    %s345 = scalar_lea.sflag [#allocation6], 1
    %346 = vsyncpa %s345, 1
    %347 = vsyncpa [#allocation4], 1
    %s348 = scalar_lea.sflag [#allocation4], 1
    %349 = vsyncpa %s348, 1

</llo_original>
